<compile_context>
chip_gen: v5e
topology: v5e:2x2
jax: 0.10.0
libtpu: 0.0.40
codegen_flags: <defaults>
</compile_context>

<pallas_src>
import functools

import jax
import jax.numpy as jnp
from jax.experimental import pallas as pl
from jax.experimental.pallas import tpu as pltpu

NEG_SLOPE = 0.01                 # PyTorch nn.LeakyReLU default
LOGIT_PAD = 128                  # lane-dense padded logits; real logits [:, :2]
VMEM_LIMIT_BYTES = 32 * 1024 * 1024


def _round_up(x, m):
    return (x + m - 1) // m * m


def _pow2_tile(n128, cap):
    """Largest power-of-two multiple of 128 that is <= min(cap, n128)."""
    t = 128
    while t * 2 <= min(cap, n128):
        t *= 2
    return t


def _leaky(y):
    return jnp.where(y >= 0, y, NEG_SLOPE * y)


def _full_spec(shape):
    nd = len(shape)
    return pl.BlockSpec(shape, lambda *_: (0,) * nd)


# --------------------------------------------------------------------------
# Kernel A: fused prelude (4x linear+LeakyReLU as one block-diag matmul,
# concat implicit, input linear+LeakyReLU, RGCN layer-1 projection).
# --------------------------------------------------------------------------
def _prelude_kernel(feats_ref, wblk_ref, bblk_ref, win_ref, bin_ref,
                    wall_ref, broot_ref, hroot_ref, hrel_ref, *, num_rel, d):
    h = jnp.dot(feats_ref[...], wblk_ref[...], preferred_element_type=jnp.float32)
    h = _leaky(h + bblk_ref[...])
    x = jnp.dot(h, win_ref[...], preferred_element_type=jnp.float32)
    x = _leaky(x + bin_ref[...])
    hall = jnp.dot(x, wall_ref[...], preferred_element_type=jnp.float32)
    hroot_ref[...] = hall[:, :d] + broot_ref[...]
    for r in range(num_rel):                      # static (num_relations = 2)
        hrel_ref[r] = hall[:, (1 + r) * d:(2 + r) * d].astype(hrel_ref.dtype)


def prelude(feats, w_blk, b_blk, w_in, b_in, w_all, b_root, *, d, num_rel, tm):
    n_pad, f_pad = feats.shape
    kernel = functools.partial(_prelude_kernel, num_rel=num_rel, d=d)
    return pl.pallas_call(
        kernel,
        out_shape=(jax.ShapeDtypeStruct((n_pad, d), jnp.float32),
                   jax.ShapeDtypeStruct((num_rel, n_pad, d), jnp.bfloat16)),
        grid=(n_pad // tm,),
        in_specs=[pl.BlockSpec((tm, f_pad), lambda i: (i, 0)),
                  _full_spec(w_blk.shape),
                  _full_spec(b_blk.shape),
                  _full_spec(w_in.shape),
                  _full_spec(b_in.shape),
                  _full_spec(w_all.shape),
                  _full_spec(b_root.shape)],
        out_specs=(pl.BlockSpec((tm, d), lambda i: (i, 0)),
                   pl.BlockSpec((num_rel, tm, d), lambda i: (0, i, 0))),
        compiler_params=pltpu.CompilerParams(
            dimension_semantics=("parallel",),
            vmem_limit_bytes=VMEM_LIMIT_BYTES),
    )(feats, w_blk, b_blk, w_in, b_in, w_all, b_root)


# --------------------------------------------------------------------------
# Kernel B: tiled RGCN aggregation + projection for the next RGCN layer.
#   acc_i = h_root_i + sum_r sum_k A_r[i,k] @ h_rel[r,k]
#   finalize: hall = acc @ W_all -> (h_root_next, h_rel_next)
#
# INVARIANT: the (relation, reduction) grid axes are the LAST two axes and are
# marked "arbitrary"; the outputs are written only under pl.when(last step) and
# their block index is constant over these axes.  Do not reorder the grid or
# mark those axes "parallel".
# --------------------------------------------------------------------------
def _rgcn_project_kernel(adj_ref, hroot_ref, hrel_ref, wall_ref, broot_ref,
                         hroot_out_ref, hrel_out_ref, acc_ref, *, num_rel, d):
    r_id = pl.program_id(1)
    k_id = pl.program_id(2)

    @pl.when(jnp.logical_and(r_id == 0, k_id == 0))
    def _():
        acc_ref[...] = hroot_ref[...]

    # single merged dot per grid step (relation folded into the reduction grid)
    acc_ref[...] += jnp.dot(adj_ref[...], hrel_ref[...],
                            preferred_element_type=jnp.float32)

    is_last = jnp.logical_and(r_id == pl.num_programs(1) - 1,
                              k_id == pl.num_programs(2) - 1)

    @pl.when(is_last)
    def _():
        x = acc_ref[...]          # dropout(p=0.3) is identity in eval mode
        hall = jnp.dot(x, wall_ref[...], preferred_element_type=jnp.float32)
        hroot_out_ref[...] = hall[:, :d] + broot_ref[...]
        for r in range(num_rel):
            hrel_out_ref[r] = hall[:, (1 + r) * d:(2 + r) * d].astype(
                hrel_out_ref.dtype)


def rgcn_project(adj, h_root, h_rel, w_all, b_root, *, d, num_rel, tm, tk):
    n_pad = h_root.shape[0]
    kpr = n_pad // tk
    flops = 2 * num_rel * n_pad * n_pad * d + 2 * n_pad * d * (num_rel + 1) * d
    bytes_accessed = (int(adj.size) * 2
                      + (n_pad // tm) * int(h_rel.size) * 2
                      + int(h_root.size) * 4 * 3)
    cost = pl.CostEstimate(flops=flops, transcendentals=0,
                           bytes_accessed=bytes_accessed)
    kernel = functools.partial(_rgcn_project_kernel, num_rel=num_rel, d=d)
    return pl.pallas_call(
        kernel,
        out_shape=(jax.ShapeDtypeStruct((n_pad, d), jnp.float32),
                   jax.ShapeDtypeStruct((num_rel, n_pad, d), jnp.bfloat16)),
        grid=(n_pad // tm, num_rel, kpr),
        in_specs=[pl.BlockSpec((None, tm, tk), lambda i, r, k: (r, i, k)),
                  pl.BlockSpec((tm, d), lambda i, r, k: (i, 0)),
                  pl.BlockSpec((None, tk, d), lambda i, r, k: (r, k, 0)),
                  _full_spec(w_all.shape),
                  _full_spec(b_root.shape)],
        out_specs=(pl.BlockSpec((tm, d), lambda i, r, k: (i, 0)),
                   pl.BlockSpec((num_rel, tm, d), lambda i, r, k: (0, i, 0))),
        scratch_shapes=[pltpu.VMEM((tm, d), jnp.float32)],
        compiler_params=pltpu.CompilerParams(
            dimension_semantics=("parallel", "arbitrary", "arbitrary"),
            vmem_limit_bytes=VMEM_LIMIT_BYTES),
        cost_estimate=cost,
    )(adj, h_root, h_rel, w_all, b_root)


# --------------------------------------------------------------------------
# Kernel C: tiled RGCN aggregation (layer 2) + fused output head.
# Same grid/accumulation invariants as Kernel B.
# --------------------------------------------------------------------------
def _rgcn_head_kernel(adj_ref, hroot_ref, hrel_ref, wout1_ref, bout1_ref,
                      wout2_ref, bout2_ref, out_ref, acc_ref):
    r_id = pl.program_id(1)
    k_id = pl.program_id(2)

    @pl.when(jnp.logical_and(r_id == 0, k_id == 0))
    def _():
        acc_ref[...] = hroot_ref[...]

    acc_ref[...] += jnp.dot(adj_ref[...], hrel_ref[...],
                            preferred_element_type=jnp.float32)

    is_last = jnp.logical_and(r_id == pl.num_programs(1) - 1,
                              k_id == pl.num_programs(2) - 1)

    @pl.when(is_last)
    def _():
        o1 = _leaky(jnp.dot(acc_ref[...], wout1_ref[...],
                            preferred_element_type=jnp.float32) + bout1_ref[...])
        out_ref[...] = (jnp.dot(o1, wout2_ref[...],
                                preferred_element_type=jnp.float32)
                        + bout2_ref[...])


def rgcn_head(adj, h_root, h_rel, w_out1, b_out1, w_out2_pad, b_out2_pad,
              *, d, num_rel, tm, tk):
    n_pad = h_root.shape[0]
    kpr = n_pad // tk
    flops = (2 * num_rel * n_pad * n_pad * d
             + 2 * n_pad * d * d + 2 * n_pad * d * LOGIT_PAD)
    bytes_accessed = (int(adj.size) * 2
                      + (n_pad // tm) * int(h_rel.size) * 2
                      + int(h_root.size) * 4 + n_pad * LOGIT_PAD * 4)
    cost = pl.CostEstimate(flops=flops, transcendentals=0,
                           bytes_accessed=bytes_accessed)
    return pl.pallas_call(
        _rgcn_head_kernel,
        out_shape=jax.ShapeDtypeStruct((n_pad, LOGIT_PAD), jnp.float32),
        grid=(n_pad // tm, num_rel, kpr),
        in_specs=[pl.BlockSpec((None, tm, tk), lambda i, r, k: (r, i, k)),
                  pl.BlockSpec((tm, d), lambda i, r, k: (i, 0)),
                  pl.BlockSpec((None, tk, d), lambda i, r, k: (r, k, 0)),
                  _full_spec(w_out1.shape),
                  _full_spec(b_out1.shape),
                  _full_spec(w_out2_pad.shape),
                  _full_spec(b_out2_pad.shape)],
        out_specs=pl.BlockSpec((tm, LOGIT_PAD), lambda i, r, k: (i, 0)),
        scratch_shapes=[pltpu.VMEM((tm, d), jnp.float32)],
        compiler_params=pltpu.CompilerParams(
            dimension_semantics=("parallel", "arbitrary", "arbitrary"),
            vmem_limit_bytes=VMEM_LIMIT_BYTES),
        cost_estimate=cost,
    )(adj, h_root, h_rel, w_out1, b_out1, w_out2_pad, b_out2_pad)


# --------------------------------------------------------------------------
# Dense per-relation mean-normalized adjacency, built directly in bf16
# (O(E) degree math, no f32 N^2 intermediate).  A[r, i, j] = count(j->i, r)
# / deg_r(i), matching torch_geometric RGCNConv aggr='mean'.
# TODO(synk): hoist/reuse across forward calls when the graph is static.
# --------------------------------------------------------------------------
def build_norm_adj(edge_index, edge_type, num_nodes_pad, num_relations):
    src = edge_index[0].astype(jnp.int32)
    dst = edge_index[1].astype(jnp.int32)
    et = edge_type.astype(jnp.int32)
    flat = et * num_nodes_pad + dst
    deg = jnp.zeros((num_relations * num_nodes_pad,), jnp.float32)
    deg = deg.at[flat].add(1.0)                     # per-(relation, node) in-degree
    inv_deg = 1.0 / jnp.maximum(deg, 1.0)           # 0-degree rows stay all-zero
    vals = inv_deg[flat].astype(jnp.bfloat16)       # per-edge 1/deg_r(dst)
    adj = jnp.zeros((num_relations, num_nodes_pad, num_nodes_pad), jnp.bfloat16)
    adj = adj.at[et, dst, src].add(vals)
    return adj                                      # (R, N_pad, N_pad) bf16


# --------------------------------------------------------------------------
# Parameter construction (deterministic, synthetic) + fused/padded repacking
# --------------------------------------------------------------------------
def init_params(key, des_size, tweet_size, num_prop_size, cat_prop_size,
                embedding_dimension, num_relations):
    emb4 = embedding_dimension // 4
    keys = jax.random.split(key, 16)

    def lin(kw, kb, fan_in, fan_out):
        bound = 1.0 / jnp.sqrt(jnp.float32(fan_in))
        w = jax.random.uniform(kw, (fan_in, fan_out), jnp.float32, -bound, bound)
        b = jax.random.uniform(kb, (1, fan_out), jnp.float32, -bound, bound)
        return w, b

    p = {}
    p["w_des"], p["b_des"] = lin(keys[0], keys[1], des_size, emb4)
    p["w_tweet"], p["b_tweet"] = lin(keys[2], keys[3], tweet_size, emb4)
    p["w_num"], p["b_num"] = lin(keys[4], keys[5], num_prop_size, emb4)
    p["w_cat"], p["b_cat"] = lin(keys[6], keys[7], cat_prop_size, emb4)
    p["w_in"], p["b_in"] = lin(keys[8], keys[9],
                               embedding_dimension, embedding_dimension)
    scale = 1.0 / jnp.sqrt(jnp.float32(embedding_dimension))
    p["rgcn_wrel"] = scale * jax.random.normal(
        keys[10], (num_relations, embedding_dimension, embedding_dimension),
        jnp.float32)
    p["rgcn_wroot"] = scale * jax.random.normal(
        keys[11], (embedding_dimension, embedding_dimension), jnp.float32)
    p["rgcn_b"] = jnp.zeros((1, embedding_dimension), jnp.float32)
    p["w_out1"], p["b_out1"] = lin(keys[12], keys[13],
                                   embedding_dimension, embedding_dimension)
    p["w_out2"], p["b_out2"] = lin(keys[14], keys[15], embedding_dimension, 2)
    return p


def prepare_fused_params(p, feat_sizes, embedding_dimension, num_relations):
    f_total = sum(feat_sizes)
    f_pad = _round_up(f_total, 128)   # aligned K dim for the prelude matmul
    # Block-diagonal weight: one lane-dense MXU pass does all four per-modality
    # linears (zero blocks keep modalities independent, matching concat).
    w_blk = jnp.zeros((f_pad, embedding_dimension), jnp.float32)
    off_in, off_out = 0, 0
    for w in (p["w_des"], p["w_tweet"], p["w_num"], p["w_cat"]):
        fi, fo = w.shape
        w_blk = w_blk.at[off_in:off_in + fi, off_out:off_out + fo].set(w)
        off_in += fi
        off_out += fo
    b_blk = jnp.concatenate([p["b_des"], p["b_tweet"], p["b_num"], p["b_cat"]],
                            axis=1)
    # W_all = [W_root | W_1 | ... | W_R]  -> single projection pass.
    w_all = jnp.concatenate(
        [p["rgcn_wroot"]] + [p["rgcn_wrel"][r] for r in range(num_relations)],
        axis=1)
    # Final 2-way head padded to 128 lanes (unmasked stores; slice outside).
    w_out2_pad = jnp.zeros((embedding_dimension, LOGIT_PAD), jnp.float32)
    w_out2_pad = w_out2_pad.at[:, :2].set(p["w_out2"])
    b_out2_pad = jnp.zeros((1, LOGIT_PAD), jnp.float32).at[:, :2].set(p["b_out2"])
    return dict(w_blk=w_blk, b_blk=b_blk, w_in=p["w_in"], b_in=p["b_in"],
                w_all=w_all, b_root=p["rgcn_b"],
                w_out1=p["w_out1"], b_out1=p["b_out1"],
                w_out2_pad=w_out2_pad, b_out2_pad=b_out2_pad, f_pad=f_pad)


# --------------------------------------------------------------------------
# Full forward pass (BotRGCN2.forward semantics, eval mode)
# --------------------------------------------------------------------------
def botrgcn2_forward(params, des, tweet, num_prop, cat_prop, edge_index,
                     edge_type, *, embedding_dimension, num_relations=2):
    n = des.shape[0]
    d = embedding_dimension
    feat_sizes = (des.shape[1], tweet.shape[1],
                  num_prop.shape[1], cat_prop.shape[1])
    f_total = sum(feat_sizes)

    # Tile choice decoupled from N: pad N up to the tile (padded adjacency rows
    # are zero, so results are unchanged).  tm<=512, tk<=1024 keeps the
    # double-buffered bf16 adjacency stream well inside the scoped-VMEM budget
    # on v5e (16 MiB default), v6e, and v7x (64 MiB physical).
    n128 = _round_up(n, 128)
    tm = _pow2_tile(n128, 512)
    tk = _pow2_tile(n128, 1024)        # tm | tk (both power-of-two * 128)
    n_pad = _round_up(n, tk)

    fused = prepare_fused_params(params, feat_sizes, d, num_relations)
    f_pad = fused["f_pad"]

    feats = jnp.concatenate([des, tweet, num_prop, cat_prop], axis=1)
    feats = jnp.pad(feats, ((0, n_pad - n), (0, f_pad - f_total)))

    adj = build_norm_adj(edge_index, edge_type, n_pad, num_relations)

    # Kernel A: prelude + RGCN-layer-1 projection.
    # NOTE: adjacency / inter-layer h_rel are bf16 (f32 in the torch ref);
    # accumulation stays f32.
    h_root, h_rel = prelude(feats, fused["w_blk"], fused["b_blk"],
                            fused["w_in"], fused["b_in"],
                            fused["w_all"], fused["b_root"],
                            d=d, num_rel=num_relations, tm=tm)

    # Kernel B: RGCN layer 1 aggregation + (eval-mode dropout) + layer-2 proj.
    h_root, h_rel = rgcn_project(adj, h_root, h_rel, fused["w_all"],
                                 fused["b_root"], d=d, num_rel=num_relations,
                                 tm=tm, tk=tk)

    # Kernel C: RGCN layer 2 aggregation + output head (lane-padded logits).
    logits_pad = rgcn_head(adj, h_root, h_rel, fused["w_out1"], fused["b_out1"],
                           fused["w_out2_pad"], fused["b_out2_pad"],
                           d=d, num_rel=num_relations, tm=tm, tk=tk)
    return logits_pad[:n, :2]


# --------------------------------------------------------------------------
# Main
# --------------------------------------------------------------------------
if __name__ == "__main__":
    # small, module-consistent sizes (embedding_dimension = module default 128,
    # which keeps every column slice / store on a 128-lane boundary)
    num_nodes = 8
    des_size = 64
    tweet_size = 64
    num_prop_size = 4
    cat_prop_size = 3
    embedding_dimension = 128         # divisible by 4 as the module requires
    num_relations = 2
    num_edges = 16

    key = jax.random.PRNGKey(0)
    k_par, k_des, k_tw, k_np, k_cp, k_src, k_dst, k_et = jax.random.split(key, 8)

    params = init_params(k_par, des_size, tweet_size, num_prop_size,
                         cat_prop_size, embedding_dimension, num_relations)

    des = jax.random.normal(k_des, (num_nodes, des_size), jnp.float32)
    tweet = jax.random.normal(k_tw, (num_nodes, tweet_size), jnp.float32)
    num_prop = jax.random.normal(k_np, (num_nodes, num_prop_size), jnp.float32)
    cat_prop = jax.random.normal(k_cp, (num_nodes, cat_prop_size), jnp.float32)

    src = jax.random.randint(k_src, (num_edges,), 0, num_nodes, jnp.int32)
    dst = jax.random.randint(k_dst, (num_edges,), 0, num_nodes, jnp.int32)
    edge_index = jnp.stack([src, dst], axis=0)            # (2, E)
    edge_type = jax.random.randint(k_et, (num_edges,), 0, num_relations, jnp.int32)

    out = botrgcn2_forward(params, des, tweet, num_prop, cat_prop,
                           edge_index, edge_type,
                           embedding_dimension=embedding_dimension,
                           num_relations=num_relations)
    out = jax.block_until_ready(out)
    assert out.shape == (num_nodes, 2)
    print("KERNEL_OK")
</pallas_src>

<mosaic_0001>
module attributes {stable_mosaic.version = 11 : i64} {
  func.func @_prelude_kernel(%arg0: i32, %arg1: memref<128x256xf32, #tpu.memory_space<vmem>>, %arg2: memref<256x128xf32, #tpu.memory_space<vmem>>, %arg3: memref<1x128xf32, #tpu.memory_space<vmem>>, %arg4: memref<128x128xf32, #tpu.memory_space<vmem>>, %arg5: memref<1x128xf32, #tpu.memory_space<vmem>>, %arg6: memref<128x384xf32, #tpu.memory_space<vmem>>, %arg7: memref<1x128xf32, #tpu.memory_space<vmem>>, %arg8: memref<128x128xf32, #tpu.memory_space<vmem>>, %arg9: memref<2x128x128xbf16, #tpu.memory_space<vmem>>) attributes {dimension_semantics = [#tpu.dimension_semantics<parallel>], iteration_bounds = array<i64: 1>, scalar_prefetch = 0 : i64, scratch_operands = 0 : i64, tpu.core_type = #tpu.core_type<tc>, window_params = [{transform_indices = @transform_0, window_bounds = array<i64: 128, 256>}, {pipeline_mode = #tpu.pipeline_mode<synchronous>, transform_indices = @transform_1, window_bounds = array<i64: 256, 128>}, {pipeline_mode = #tpu.pipeline_mode<synchronous>, transform_indices = @transform_2, window_bounds = array<i64: 1, 128>}, {pipeline_mode = #tpu.pipeline_mode<synchronous>, transform_indices = @transform_3, window_bounds = array<i64: 128, 128>}, {pipeline_mode = #tpu.pipeline_mode<synchronous>, transform_indices = @transform_4, window_bounds = array<i64: 1, 128>}, {pipeline_mode = #tpu.pipeline_mode<synchronous>, transform_indices = @transform_5, window_bounds = array<i64: 128, 384>}, {pipeline_mode = #tpu.pipeline_mode<synchronous>, transform_indices = @transform_6, window_bounds = array<i64: 1, 128>}, {transform_indices = @transform_7, window_bounds = array<i64: 128, 128>}, {transform_indices = @transform_8, window_bounds = array<i64: 2, 128, 128>}]} {
    %c0 = arith.constant 0 : index
    %c0_0 = arith.constant 0 : index
    %0 = vector.load %arg1[%c0, %c0_0] : memref<128x256xf32, #tpu.memory_space<vmem>>, vector<128x256xf32>
    %c0_1 = arith.constant 0 : index
    %c0_2 = arith.constant 0 : index
    %1 = vector.load %arg2[%c0_1, %c0_2] : memref<256x128xf32, #tpu.memory_space<vmem>>, vector<256x128xf32>
    %cst = arith.constant dense<0.000000e+00> : vector<128x128xf32>
    %2 = tpu.matmul %0, %1, %cst {dimension_numbers = #tpu.dot_dimension_numbers<[1], [0], [0], [1], [0, 0, 1, 1], [], []>} : vector<128x256xf32>, vector<256x128xf32>, vector<128x128xf32> -> vector<128x128xf32>
    %c0_3 = arith.constant 0 : index
    %c0_4 = arith.constant 0 : index
    %3 = vector.load %arg3[%c0_3, %c0_4] : memref<1x128xf32, #tpu.memory_space<vmem>>, vector<1x128xf32>
    %4 = vector.broadcast %3 : vector<1x128xf32> to vector<128x128xf32>
    %5 = arith.addf %2, %4 : vector<128x128xf32>
    %cst_5 = arith.constant 0.000000e+00 : f32
    %6 = vector.broadcast %cst_5 : f32 to vector<128x128xf32>
    %7 = arith.cmpf oge, %5, %6 : vector<128x128xf32>
    %cst_6 = arith.constant 0.00999999977 : f32
    %8 = vector.broadcast %cst_6 : f32 to vector<128x128xf32>
    %9 = arith.mulf %8, %5 : vector<128x128xf32>
    %10 = arith.select %7, %5, %9 : vector<128x128xi1>, vector<128x128xf32>
    %c0_7 = arith.constant 0 : index
    %c0_8 = arith.constant 0 : index
    %11 = vector.load %arg4[%c0_7, %c0_8] : memref<128x128xf32, #tpu.memory_space<vmem>>, vector<128x128xf32>
    %cst_9 = arith.constant dense<0.000000e+00> : vector<128x128xf32>
    %12 = tpu.matmul %10, %11, %cst_9 {dimension_numbers = #tpu.dot_dimension_numbers<[1], [0], [0], [1], [0, 0, 1, 1], [], []>} : vector<128x128xf32>, vector<128x128xf32>, vector<128x128xf32> -> vector<128x128xf32>
    %c0_10 = arith.constant 0 : index
    %c0_11 = arith.constant 0 : index
    %13 = vector.load %arg5[%c0_10, %c0_11] : memref<1x128xf32, #tpu.memory_space<vmem>>, vector<1x128xf32>
    %14 = vector.broadcast %13 : vector<1x128xf32> to vector<128x128xf32>
    %15 = arith.addf %12, %14 : vector<128x128xf32>
    %cst_12 = arith.constant 0.000000e+00 : f32
    %16 = vector.broadcast %cst_12 : f32 to vector<128x128xf32>
    %17 = arith.cmpf oge, %15, %16 : vector<128x128xf32>
    %cst_13 = arith.constant 0.00999999977 : f32
    %18 = vector.broadcast %cst_13 : f32 to vector<128x128xf32>
    %19 = arith.mulf %18, %15 : vector<128x128xf32>
    %20 = arith.select %17, %15, %19 : vector<128x128xi1>, vector<128x128xf32>
    %c0_14 = arith.constant 0 : index
    %c0_15 = arith.constant 0 : index
    %21 = vector.load %arg6[%c0_14, %c0_15] : memref<128x384xf32, #tpu.memory_space<vmem>>, vector<128x384xf32>
    %cst_16 = arith.constant dense<0.000000e+00> : vector<128x384xf32>
    %22 = tpu.matmul %20, %21, %cst_16 {dimension_numbers = #tpu.dot_dimension_numbers<[1], [0], [0], [1], [0, 0, 1, 1], [], []>} : vector<128x128xf32>, vector<128x384xf32>, vector<128x384xf32> -> vector<128x384xf32>
    %23 = vector.extract_strided_slice %22 {offsets = [0, 0], sizes = [128, 128], strides = [1, 1]} : vector<128x384xf32> to vector<128x128xf32>
    %c0_17 = arith.constant 0 : index
    %c0_18 = arith.constant 0 : index
    %24 = vector.load %arg7[%c0_17, %c0_18] : memref<1x128xf32, #tpu.memory_space<vmem>>, vector<1x128xf32>
    %25 = vector.broadcast %24 : vector<1x128xf32> to vector<128x128xf32>
    %26 = arith.addf %23, %25 : vector<128x128xf32>
    %c0_19 = arith.constant 0 : index
    %c0_20 = arith.constant 0 : index
    %27 = vector.load %arg8[%c0_19, %c0_20] : memref<128x128xf32, #tpu.memory_space<vmem>>, vector<128x128xf32>
    tpu.vector_store %arg8[%c0_19, %c0_20], %26 {strides = array<i32>} : memref<128x128xf32, #tpu.memory_space<vmem>>, vector<128x128xf32>,
    %28 = vector.extract_strided_slice %22 {offsets = [0, 128], sizes = [128, 128], strides = [1, 1]} : vector<128x384xf32> to vector<128x128xf32>
    %29 = arith.truncf %28 : vector<128x128xf32> to vector<128x128xbf16>
    %c0_21 = arith.constant 0 : index
    %c0_22 = arith.constant 0 : index
    %c0_23 = arith.constant 0 : index
    %30 = vector.load %arg9[%c0_21, %c0_22, %c0_23] : memref<2x128x128xbf16, #tpu.memory_space<vmem>>, vector<1x128x128xbf16>
    %31 = vector.shape_cast %30 : vector<1x128x128xbf16> to vector<128x128xbf16>
    %32 = vector.shape_cast %29 : vector<128x128xbf16> to vector<1x128x128xbf16>
    tpu.vector_store %arg9[%c0_21, %c0_22, %c0_23], %32 {strides = array<i32>} : memref<2x128x128xbf16, #tpu.memory_space<vmem>>, vector<1x128x128xbf16>,
    %33 = vector.extract_strided_slice %22 {offsets = [0, 256], sizes = [128, 128], strides = [1, 1]} : vector<128x384xf32> to vector<128x128xf32>
    %34 = arith.truncf %33 : vector<128x128xf32> to vector<128x128xbf16>
    %c1 = arith.constant 1 : index
    %c0_24 = arith.constant 0 : index
    %c0_25 = arith.constant 0 : index
    %35 = vector.load %arg9[%c1, %c0_24, %c0_25] : memref<2x128x128xbf16, #tpu.memory_space<vmem>>, vector<1x128x128xbf16>
    %36 = vector.shape_cast %35 : vector<1x128x128xbf16> to vector<128x128xbf16>
    %37 = vector.shape_cast %34 : vector<128x128xbf16> to vector<1x128x128xbf16>
    tpu.vector_store %arg9[%c1, %c0_24, %c0_25], %37 {strides = array<i32>} : memref<2x128x128xbf16, #tpu.memory_space<vmem>>, vector<1x128x128xbf16>,
    return
  }
  func.func @transform_0(%arg0: i32) -> (i32, i32) {
    %c0_i32 = arith.constant 0 : i32
    %c0_i32_0 = arith.constant 0 : i32
    return %arg0, %c0_i32 : i32, i32
  }
  func.func @transform_1(%arg0: i32) -> (i32, i32) {
    %c0_i32 = arith.constant 0 : i32
    %c0_i32_0 = arith.constant 0 : i32
    %c0_i32_1 = arith.constant 0 : i32
    return %c0_i32, %c0_i32_0 : i32, i32
  }
  func.func @transform_2(%arg0: i32) -> (i32, i32) {
    %c0_i32 = arith.constant 0 : i32
    %c0_i32_0 = arith.constant 0 : i32
    %c0_i32_1 = arith.constant 0 : i32
    return %c0_i32, %c0_i32_0 : i32, i32
  }
  func.func @transform_3(%arg0: i32) -> (i32, i32) {
    %c0_i32 = arith.constant 0 : i32
    %c0_i32_0 = arith.constant 0 : i32
    %c0_i32_1 = arith.constant 0 : i32
    return %c0_i32, %c0_i32_0 : i32, i32
  }
  func.func @transform_4(%arg0: i32) -> (i32, i32) {
    %c0_i32 = arith.constant 0 : i32
    %c0_i32_0 = arith.constant 0 : i32
    %c0_i32_1 = arith.constant 0 : i32
    return %c0_i32, %c0_i32_0 : i32, i32
  }
  func.func @transform_5(%arg0: i32) -> (i32, i32) {
    %c0_i32 = arith.constant 0 : i32
    %c0_i32_0 = arith.constant 0 : i32
    %c0_i32_1 = arith.constant 0 : i32
    return %c0_i32, %c0_i32_0 : i32, i32
  }
  func.func @transform_6(%arg0: i32) -> (i32, i32) {
    %c0_i32 = arith.constant 0 : i32
    %c0_i32_0 = arith.constant 0 : i32
    %c0_i32_1 = arith.constant 0 : i32
    return %c0_i32, %c0_i32_0 : i32, i32
  }
  func.func @transform_7(%arg0: i32) -> (i32, i32) {
    %c0_i32 = arith.constant 0 : i32
    %c0_i32_0 = arith.constant 0 : i32
    return %arg0, %c0_i32 : i32, i32
  }
  func.func @transform_8(%arg0: i32) -> (i32, i32, i32) {
    %c0_i32 = arith.constant 0 : i32
    %c0_i32_0 = arith.constant 0 : i32
    %c0_i32_1 = arith.constant 0 : i32
    return %c0_i32, %arg0, %c0_i32_0 : i32, i32, i32
  }
}

</mosaic_0001>

<llo_original>
// kernel: tpu_custom_call.1
$region0: #{tpu_custom_call.1}
  #allocation0 [shape = 'u32[]', space=smem, size = 0x4, offset = 0x4, fixed_abs, tag = 'smem constant byte address 0x4 - core index']
  #allocation1 [shape = 'u32[72,128]{1,0:T(1,128)}', space=vmem, size = 0x9000, scoped, tag = 'internal scratch']
  %s0 = inlined_call_operand.hbm [shape: f32[128,256], index: 0, kind: input, shape index: {}]
  %s1 = inlined_call_operand.hbm [shape: f32[256,128], index: 1, kind: input, shape index: {}]
  %s2 = inlined_call_operand.vmem [shape: f32[1,128], index: 2, kind: input, shape index: {}]
  %s3 = inlined_call_operand.hbm [shape: f32[128,128], index: 3, kind: input, shape index: {}]
  %s4 = inlined_call_operand.vmem [shape: f32[1,128], index: 4, kind: input, shape index: {}]
  %s5 = inlined_call_operand.hbm [shape: f32[128,384], index: 5, kind: input, shape index: {}]
  %s6 = inlined_call_operand.vmem [shape: f32[1,128], index: 6, kind: input, shape index: {}]
  %s7 = inlined_call_operand.hbm [shape: f32[128,128], index: 7, kind: output, shape index: {0}]
  %s8 = inlined_call_operand.hbm [shape: bf16[2,128,128], index: 8, kind: output, shape index: {1}]
  %9 = xla_tuple %s7, %s8
  %s10 = sld [smem:[#allocation0]]
  $region62: #{tpu_custom_call.1} parent=0
    _
  %s12 = ssub.s32 1, %s10
  %s13 = scalar_select 0, %s12, %s10
  $region1: #{tpu_custom_call.1} parent=0
    #allocation2 [shape = 'u8[131072]{0}', space=vmem, size = 0x20000, scoped, tag = 'input window, operand 0, single buffered']
    #allocation3 [shape = 's32[1]{0}', space=sflag, size = 0x4, scoped, tag = 'scoped memory for tpu_custom_call.1']
    #allocation4 [shape = 's32[1]{0}', space=sflag, size = 0x4, scoped, tag = 'scoped memory for tpu_custom_call.1']
    #allocation5 [shape = 'u8[131072]{0}', space=vmem, size = 0x20000, scoped, tag = 'input window, operand 1, single buffered']
    #allocation6 [shape = 's32[1]{0}', space=sflag, size = 0x4, scoped, tag = 'scoped memory for tpu_custom_call.1']
    #allocation7 [shape = 'u8[65536]{0}', space=vmem, size = 0x10000, scoped, tag = 'input window, operand 3, single buffered']
    #allocation8 [shape = 'u8[196608]{0}', space=vmem, size = 0x30000, scoped, tag = 'input window, operand 5, single buffered']
    #allocation9 [shape = 's32[1]{0}', space=sflag, size = 0x4, scoped, tag = 'scoped memory for tpu_custom_call.1']
    #allocation10 [shape = 'u8[65536]{0}', space=vmem, size = 0x10000, scoped, tag = 'output window, operand 0, single buffered']
    #allocation11 [shape = 'u8[65536]{0}', space=vmem, size = 0x10000, scoped, tag = 'output window, operand 1, single buffered']
    #allocation12 [shape = 's32[1]{0}', space=sflag, size = 0x4, scoped, tag = 'scoped memory for tpu_custom_call.1']
    %14 = vsyncpa [#allocation3], 0
    %15 = vsyncpa [#allocation6], 0
    %16 = vsyncpa [#allocation9], 0
    %17 = vsyncpa [#allocation4], 0
    %18 = vsyncpa [#allocation12], 0
    // Predicated region
    $region2: #{tpu_custom_call.1} parent=1 // pred_check
      _
    $region3: #{tpu_custom_call.1} parent=1 // pred_check_branch
      %20 = sbr.rel (0) target = $region5
    $region4: #{tpu_custom_call.1} parent=1 // pred_region
      %22 = vsyncadd [#allocation3], 0
      %s23 = sshll.u32 %s0, 4
      %s24 = int_to_ptr.hbm [resolvable:$true] %s23
      %s25 = sshll.u32 [#allocation2], 4
      %s26 = int_to_ptr.vmem [resolvable:$true] %s25
      %31 = dma.hbm_to_vmem [thread:$0]  %s24, 4096, %s26, [#allocation3], 256, 256, 16
    $region5: #{tpu_custom_call.1} parent=1 // pred_fallthru
      _
    // Predicated region
    $region6: #{tpu_custom_call.1} parent=1 // pred_check
      _
    $region7: #{tpu_custom_call.1} parent=1 // pred_check_branch
      %33 = sbr.rel (0) target = $region9
    $region8: #{tpu_custom_call.1} parent=1 // pred_region
      %35 = vsyncadd [#allocation6], 0
      %s36 = sshll.u32 %s1, 4
      %s37 = int_to_ptr.hbm [resolvable:$true] %s36
      %s38 = sshll.u32 [#allocation5], 4
      %s39 = int_to_ptr.vmem [resolvable:$true] %s38
      %44 = dma.hbm_to_vmem [thread:$0]  %s37, 4096, %s39, [#allocation6], 128, 128, 8
    $region9: #{tpu_custom_call.1} parent=1 // pred_fallthru
      _
    // Predicated region
    $region10: #{tpu_custom_call.1} parent=1 // pred_check
      _
    $region11: #{tpu_custom_call.1} parent=1 // pred_check_branch
      %46 = sbr.rel (0) target = $region13
    $region12: #{tpu_custom_call.1} parent=1 // pred_region
      _
    $region13: #{tpu_custom_call.1} parent=1 // pred_fallthru
      _
    // Predicated region
    $region14: #{tpu_custom_call.1} parent=1 // pred_check
      _
    $region15: #{tpu_custom_call.1} parent=1 // pred_check_branch
      %48 = sbr.rel (0) target = $region17
    $region16: #{tpu_custom_call.1} parent=1 // pred_region
      %50 = vsyncadd [#allocation6], 0
      %s51 = sshll.u32 %s3, 4
      %s52 = int_to_ptr.hbm [resolvable:$true] %s51
      %s53 = sshll.u32 [#allocation7], 4
      %s54 = int_to_ptr.vmem [resolvable:$true] %s53
      %59 = dma.hbm_to_vmem [thread:$0]  %s52, 2048, %s54, [#allocation6], 128, 128, 8
    $region17: #{tpu_custom_call.1} parent=1 // pred_fallthru
      _
    // Predicated region
    $region18: #{tpu_custom_call.1} parent=1 // pred_check
      _
    $region19: #{tpu_custom_call.1} parent=1 // pred_check_branch
      %61 = sbr.rel (0) target = $region21
    $region20: #{tpu_custom_call.1} parent=1 // pred_region
      _
    $region21: #{tpu_custom_call.1} parent=1 // pred_fallthru
      _
    // Predicated region
    $region22: #{tpu_custom_call.1} parent=1 // pred_check
      _
    $region23: #{tpu_custom_call.1} parent=1 // pred_check_branch
      %63 = sbr.rel (0) target = $region25
    $region24: #{tpu_custom_call.1} parent=1 // pred_region
      %65 = vsyncadd [#allocation9], 0
      %s66 = sshll.u32 %s5, 4
      %s67 = int_to_ptr.hbm [resolvable:$true] %s66
      %s68 = sshll.u32 [#allocation8], 4
      %s69 = int_to_ptr.vmem [resolvable:$true] %s68
      %74 = dma.hbm_to_vmem [thread:$0]  %s67, 6144, %s69, [#allocation9], 384, 384, 24
    $region25: #{tpu_custom_call.1} parent=1 // pred_fallthru
      _
    // Predicated region
    $region26: #{tpu_custom_call.1} parent=1 // pred_check
      _
    $region27: #{tpu_custom_call.1} parent=1 // pred_check_branch
      %76 = sbr.rel (0) target = $region29
    $region28: #{tpu_custom_call.1} parent=1 // pred_region
      _
    $region29: #{tpu_custom_call.1} parent=1 // pred_fallthru
      _
    // Predicated region
    $region30: #{tpu_custom_call.1} parent=1 // pred_check
      _
    $region31: #{tpu_custom_call.1} parent=1 // pred_check_branch
      %78 = sbr.rel (0) target = $region33
    $region32: #{tpu_custom_call.1} parent=1 // pred_region
      %80 = dma.done [#allocation3], 4096
    $region33: #{tpu_custom_call.1} parent=1 // pred_fallthru
      _
    // Predicated region
    $region34: #{tpu_custom_call.1} parent=1 // pred_check
      _
    $region35: #{tpu_custom_call.1} parent=1 // pred_check_branch
      %82 = sbr.rel (0) target = $region37
    $region36: #{tpu_custom_call.1} parent=1 // pred_region
      %84 = dma.done [#allocation6], 4096
    $region37: #{tpu_custom_call.1} parent=1 // pred_fallthru
      _
    // Predicated region
    $region38: #{tpu_custom_call.1} parent=1 // pred_check
      _
    $region39: #{tpu_custom_call.1} parent=1 // pred_check_branch
      %86 = sbr.rel (0) target = $region41
    $region40: #{tpu_custom_call.1} parent=1 // pred_region
      %88 = dma.done [#allocation6], 2048
    $region41: #{tpu_custom_call.1} parent=1 // pred_fallthru
      _
    // Predicated region
    $region42: #{tpu_custom_call.1} parent=1 // pred_check
      _
    $region43: #{tpu_custom_call.1} parent=1 // pred_check_branch
      %90 = sbr.rel (0) target = $region45
    $region44: #{tpu_custom_call.1} parent=1 // pred_region
      %92 = dma.done [#allocation9], 6144
    $region45: #{tpu_custom_call.1} parent=1 // pred_fallthru
      _
    %v93 = vld [vmem:[#allocation2] sm:$0xff]
    %v94 = vld [vmem:[#allocation2 + $0x8] sm:$0xff]
    %v95 = vld [vmem:[#allocation2 + $0x10] sm:$0xff]
    %v96 = vld [vmem:[#allocation2 + $0x18] sm:$0xff]
    %v97 = vld [vmem:[#allocation2 + $0x20] sm:$0xff]
    %v98 = vld [vmem:[#allocation2 + $0x28] sm:$0xff]
    %v99 = vld [vmem:[#allocation2 + $0x30] sm:$0xff]
    %v100 = vld [vmem:[#allocation2 + $0x38] sm:$0xff]
    %v101 = vld [vmem:[#allocation2 + $0x40] sm:$0xff]
    %v102 = vld [vmem:[#allocation2 + $0x48] sm:$0xff]
    %v103 = vld [vmem:[#allocation2 + $0x50] sm:$0xff]
    %v104 = vld [vmem:[#allocation2 + $0x58] sm:$0xff]
    %v105 = vld [vmem:[#allocation2 + $0x60] sm:$0xff]
    %v106 = vld [vmem:[#allocation2 + $0x68] sm:$0xff]
    %v107 = vld [vmem:[#allocation2 + $0x70] sm:$0xff]
    %v108 = vld [vmem:[#allocation2 + $0x78] sm:$0xff]
    %v109 = vld [vmem:[#allocation2 + $0x80] sm:$0xff]
    %v110 = vld [vmem:[#allocation2 + $0x88] sm:$0xff]
    %v111 = vld [vmem:[#allocation2 + $0x90] sm:$0xff]
    %v112 = vld [vmem:[#allocation2 + $0x98] sm:$0xff]
    %v113 = vld [vmem:[#allocation2 + $0xa0] sm:$0xff]
    %v114 = vld [vmem:[#allocation2 + $0xa8] sm:$0xff]
    %v115 = vld [vmem:[#allocation2 + $0xb0] sm:$0xff]
    %v116 = vld [vmem:[#allocation2 + $0xb8] sm:$0xff]
    %v117 = vld [vmem:[#allocation2 + $0xc0] sm:$0xff]
    %v118 = vld [vmem:[#allocation2 + $0xc8] sm:$0xff]
    %v119 = vld [vmem:[#allocation2 + $0xd0] sm:$0xff]
    %v120 = vld [vmem:[#allocation2 + $0xd8] sm:$0xff]
    %v121 = vld [vmem:[#allocation2 + $0xe0] sm:$0xff]
    %v122 = vld [vmem:[#allocation2 + $0xe8] sm:$0xff]
    %v123 = vld [vmem:[#allocation2 + $0xf0] sm:$0xff]
    %v124 = vld [vmem:[#allocation2 + $0xf8] sm:$0xff]
    %v125 = vld [vmem:[#allocation5] sm:$0xff]
    %v126 = vld [vmem:[#allocation5 + $0x8] sm:$0xff]
    %v127 = vld [vmem:[#allocation5 + $0x10] sm:$0xff]
    %v128 = vld [vmem:[#allocation5 + $0x18] sm:$0xff]
    %v129 = vld [vmem:[#allocation5 + $0x20] sm:$0xff]
    %v130 = vld [vmem:[#allocation5 + $0x28] sm:$0xff]
    %v131 = vld [vmem:[#allocation5 + $0x30] sm:$0xff]
    %v132 = vld [vmem:[#allocation5 + $0x38] sm:$0xff]
    %v133 = vld [vmem:[#allocation5 + $0x40] sm:$0xff]
    %v134 = vld [vmem:[#allocation5 + $0x48] sm:$0xff]
    %v135 = vld [vmem:[#allocation5 + $0x50] sm:$0xff]
    %v136 = vld [vmem:[#allocation5 + $0x58] sm:$0xff]
    %v137 = vld [vmem:[#allocation5 + $0x60] sm:$0xff]
    %v138 = vld [vmem:[#allocation5 + $0x68] sm:$0xff]
    %v139 = vld [vmem:[#allocation5 + $0x70] sm:$0xff]
    %v140 = vld [vmem:[#allocation5 + $0x78] sm:$0xff]
    %v141 = vld [vmem:[#allocation5 + $0x80] sm:$0xff]
    %v142 = vld [vmem:[#allocation5 + $0x88] sm:$0xff]
    %v143 = vld [vmem:[#allocation5 + $0x90] sm:$0xff]
    %v144 = vld [vmem:[#allocation5 + $0x98] sm:$0xff]
    %v145 = vld [vmem:[#allocation5 + $0xa0] sm:$0xff]
    %v146 = vld [vmem:[#allocation5 + $0xa8] sm:$0xff]
    %v147 = vld [vmem:[#allocation5 + $0xb0] sm:$0xff]
    %v148 = vld [vmem:[#allocation5 + $0xb8] sm:$0xff]
    %v149 = vld [vmem:[#allocation5 + $0xc0] sm:$0xff]
    %v150 = vld [vmem:[#allocation5 + $0xc8] sm:$0xff]
    %v151 = vld [vmem:[#allocation5 + $0xd0] sm:$0xff]
    %v152 = vld [vmem:[#allocation5 + $0xd8] sm:$0xff]
    %v153 = vld [vmem:[#allocation5 + $0xe0] sm:$0xff]
    %v154 = vld [vmem:[#allocation5 + $0xe8] sm:$0xff]
    %v155 = vld [vmem:[#allocation5 + $0xf0] sm:$0xff]
    %v156 = vld [vmem:[#allocation5 + $0xf8] sm:$0xff]
    %v157 = vld [vmem:[%s2] sm:$0x1]
    %v159 = vperm.slane %v157, 0
    %161 = vmatpush.msra.mxu0 %v140
    %162 = vmatpush.msra.mxu0 %v139
    %163 = vmatpush.msra.mxu0 %v138
    %164 = vmatpush.msra.mxu0 %v137
    %165 = vmatpush.msra.mxu0 %v136
    %166 = vmatpush.msra.mxu0 %v135
    %167 = vmatpush.msra.mxu0 %v134
    %168 = vmatpush.msra.mxu0 %v133
    %169 = vmatpush.msra.mxu0 %v132
    %170 = vmatpush.msra.mxu0 %v131
    %171 = vmatpush.msra.mxu0 %v130
    %172 = vmatpush.msra.mxu0 %v129
    %173 = vmatpush.msra.mxu0 %v128
    %174 = vmatpush.msra.mxu0 %v127
    %175 = vmatpush.msra.mxu0 %v126
    %176 = vmatpush.msra.mxu0 %v125
    %177 = vmatmul.f32.gmra.mxu0 %v93
    %v178 = vpop.f32.mrf.mxu0
    %v179 = vadd.f32 %v159, %v178
    %180 = vmatmul.f32.gmra.mxu0 %v95
    %v181 = vpop.f32.mrf.mxu0
    %v182 = vadd.f32 %v159, %v181
    %183 = vmatmul.f32.gmra.mxu0 %v97
    %v184 = vpop.f32.mrf.mxu0
    %v185 = vadd.f32 %v159, %v184
    %186 = vmatmul.f32.gmra.mxu0 %v99
    %v187 = vpop.f32.mrf.mxu0
    %v188 = vadd.f32 %v159, %v187
    %189 = vmatmul.f32.gmra.mxu0 %v101
    %v190 = vpop.f32.mrf.mxu0
    %v191 = vadd.f32 %v159, %v190
    %192 = vmatmul.f32.gmra.mxu0 %v103
    %v193 = vpop.f32.mrf.mxu0
    %v194 = vadd.f32 %v159, %v193
    %195 = vmatmul.f32.gmra.mxu0 %v105
    %v196 = vpop.f32.mrf.mxu0
    %v197 = vadd.f32 %v159, %v196
    %198 = vmatmul.f32.gmra.mxu0 %v107
    %v199 = vpop.f32.mrf.mxu0
    %v200 = vadd.f32 %v159, %v199
    %201 = vmatmul.f32.gmra.mxu0 %v109
    %v202 = vpop.f32.mrf.mxu0
    %v203 = vadd.f32 %v159, %v202
    %204 = vmatmul.f32.gmra.mxu0 %v111
    %v205 = vpop.f32.mrf.mxu0
    %v206 = vadd.f32 %v159, %v205
    %207 = vmatmul.f32.gmra.mxu0 %v113
    %v208 = vpop.f32.mrf.mxu0
    %v209 = vadd.f32 %v159, %v208
    %210 = vmatmul.f32.gmra.mxu0 %v115
    %v211 = vpop.f32.mrf.mxu0
    %v212 = vadd.f32 %v159, %v211
    %213 = vmatmul.f32.gmra.mxu0 %v117
    %v214 = vpop.f32.mrf.mxu0
    %v215 = vadd.f32 %v159, %v214
    %216 = vmatmul.f32.gmra.mxu0 %v119
    %v217 = vpop.f32.mrf.mxu0
    %v218 = vadd.f32 %v159, %v217
    %219 = vmatmul.f32.gmra.mxu0 %v121
    %v220 = vpop.f32.mrf.mxu0
    %v221 = vadd.f32 %v159, %v220
    %222 = vmatmul.f32.gmra.mxu0 %v123
    %v223 = vpop.f32.mrf.mxu0
    %v224 = vadd.f32 %v159, %v223
    %225 = vdwg.mxu0
    %226 = vmatpush.msra.mxu0 %v156
    %227 = vmatpush.msra.mxu0 %v155
    %228 = vmatpush.msra.mxu0 %v154
    %229 = vmatpush.msra.mxu0 %v153
    %230 = vmatpush.msra.mxu0 %v152
    %231 = vmatpush.msra.mxu0 %v151
    %232 = vmatpush.msra.mxu0 %v150
    %233 = vmatpush.msra.mxu0 %v149
    %234 = vmatpush.msra.mxu0 %v148
    %235 = vmatpush.msra.mxu0 %v147
    %236 = vmatpush.msra.mxu0 %v146
    %237 = vmatpush.msra.mxu0 %v145
    %238 = vmatpush.msra.mxu0 %v144
    %239 = vmatpush.msra.mxu0 %v143
    %240 = vmatpush.msra.mxu0 %v142
    %241 = vmatpush.msra.mxu0 %v141
    %242 = vmatmul.f32.gmra.mxu0 %v94
    %v243 = vpop.f32.mrf.mxu0
    %v244 = vadd.f32 %v179, %v243
    %245 = vmatmul.f32.gmra.mxu0 %v96
    %v246 = vpop.f32.mrf.mxu0
    %v247 = vadd.f32 %v182, %v246
    %248 = vmatmul.f32.gmra.mxu0 %v98
    %v249 = vpop.f32.mrf.mxu0
    %v250 = vadd.f32 %v185, %v249
    %251 = vmatmul.f32.gmra.mxu0 %v100
    %v252 = vpop.f32.mrf.mxu0
    %v253 = vadd.f32 %v188, %v252
    %254 = vmatmul.f32.gmra.mxu0 %v102
    %v255 = vpop.f32.mrf.mxu0
    %v256 = vadd.f32 %v191, %v255
    %257 = vmatmul.f32.gmra.mxu0 %v104
    %v258 = vpop.f32.mrf.mxu0
    %v259 = vadd.f32 %v194, %v258
    %260 = vmatmul.f32.gmra.mxu0 %v106
    %v261 = vpop.f32.mrf.mxu0
    %v262 = vadd.f32 %v197, %v261
    %263 = vmatmul.f32.gmra.mxu0 %v108
    %v264 = vpop.f32.mrf.mxu0
    %v265 = vadd.f32 %v200, %v264
    %266 = vmatmul.f32.gmra.mxu0 %v110
    %v267 = vpop.f32.mrf.mxu0
    %v268 = vadd.f32 %v203, %v267
    %269 = vmatmul.f32.gmra.mxu0 %v112
    %v270 = vpop.f32.mrf.mxu0
    %v271 = vadd.f32 %v206, %v270
    %272 = vmatmul.f32.gmra.mxu0 %v114
    %v273 = vpop.f32.mrf.mxu0
    %v274 = vadd.f32 %v209, %v273
    %275 = vmatmul.f32.gmra.mxu0 %v116
    %v276 = vpop.f32.mrf.mxu0
    %v277 = vadd.f32 %v212, %v276
    %278 = vmatmul.f32.gmra.mxu0 %v118
    %v279 = vpop.f32.mrf.mxu0
    %v280 = vadd.f32 %v215, %v279
    %281 = vmatmul.f32.gmra.mxu0 %v120
    %v282 = vpop.f32.mrf.mxu0
    %v283 = vadd.f32 %v218, %v282
    %284 = vmatmul.f32.gmra.mxu0 %v122
    %v285 = vpop.f32.mrf.mxu0
    %v286 = vadd.f32 %v221, %v285
    %287 = vmatmul.f32.gmra.mxu0 %v124
    %v288 = vpop.f32.mrf.mxu0
    %v289 = vadd.f32 %v224, %v288
    %290 = vdwg.mxu0
    %vm291 = vcmp.ge.f32.partialorder %v244, 0.0
    %vm292 = vcmp.ge.f32.partialorder %v247, 0.0
    %vm293 = vcmp.ge.f32.partialorder %v250, 0.0
    %vm294 = vcmp.ge.f32.partialorder %v253, 0.0
    %vm295 = vcmp.ge.f32.partialorder %v256, 0.0
    %vm296 = vcmp.ge.f32.partialorder %v259, 0.0
    %vm297 = vcmp.ge.f32.partialorder %v262, 0.0
    %vm298 = vcmp.ge.f32.partialorder %v265, 0.0
    %vm299 = vcmp.ge.f32.partialorder %v268, 0.0
    %vm300 = vcmp.ge.f32.partialorder %v271, 0.0
    %vm301 = vcmp.ge.f32.partialorder %v274, 0.0
    %vm302 = vcmp.ge.f32.partialorder %v277, 0.0
    %vm303 = vcmp.ge.f32.partialorder %v280, 0.0
    %vm304 = vcmp.ge.f32.partialorder %v283, 0.0
    %vm305 = vcmp.ge.f32.partialorder %v286, 0.0
    %vm306 = vcmp.ge.f32.partialorder %v289, 0.0
    %v307 = vmul.f32 %v244, 0.01
    %v308 = vmul.f32 %v247, 0.01
    %v309 = vmul.f32 %v250, 0.01
    %v310 = vmul.f32 %v253, 0.01
    %v311 = vmul.f32 %v256, 0.01
    %v312 = vmul.f32 %v259, 0.01
    %v313 = vmul.f32 %v262, 0.01
    %v314 = vmul.f32 %v265, 0.01
    %v315 = vmul.f32 %v268, 0.01
    %v316 = vmul.f32 %v271, 0.01
    %v317 = vmul.f32 %v274, 0.01
    %v318 = vmul.f32 %v277, 0.01
    %v319 = vmul.f32 %v280, 0.01
    %v320 = vmul.f32 %v283, 0.01
    %v321 = vmul.f32 %v286, 0.01
    %v322 = vmul.f32 %v289, 0.01
    %v323 = vsel %vm291, %v244, %v307
    %v324 = vsel %vm292, %v247, %v308
    %v325 = vsel %vm293, %v250, %v309
    %v326 = vsel %vm294, %v253, %v310
    %v327 = vsel %vm295, %v256, %v311
    %v328 = vsel %vm296, %v259, %v312
    %v329 = vsel %vm297, %v262, %v313
    %v330 = vsel %vm298, %v265, %v314
    %v331 = vsel %vm299, %v268, %v315
    %v332 = vsel %vm300, %v271, %v316
    %v333 = vsel %vm301, %v274, %v317
    %v334 = vsel %vm302, %v277, %v318
    %v335 = vsel %vm303, %v280, %v319
    %v336 = vsel %vm304, %v283, %v320
    %v337 = vsel %vm305, %v286, %v321
    %v338 = vsel %vm306, %v289, %v322
    %v339 = vld [vmem:[#allocation7] sm:$0xff]
    %v340 = vld [vmem:[#allocation7 + $0x8] sm:$0xff]
    %v341 = vld [vmem:[#allocation7 + $0x10] sm:$0xff]
    %v342 = vld [vmem:[#allocation7 + $0x18] sm:$0xff]
    %v343 = vld [vmem:[#allocation7 + $0x20] sm:$0xff]
    %v344 = vld [vmem:[#allocation7 + $0x28] sm:$0xff]
    %v345 = vld [vmem:[#allocation7 + $0x30] sm:$0xff]
    %v346 = vld [vmem:[#allocation7 + $0x38] sm:$0xff]
    %v347 = vld [vmem:[#allocation7 + $0x40] sm:$0xff]
    %v348 = vld [vmem:[#allocation7 + $0x48] sm:$0xff]
    %v349 = vld [vmem:[#allocation7 + $0x50] sm:$0xff]
    %v350 = vld [vmem:[#allocation7 + $0x58] sm:$0xff]
    %v351 = vld [vmem:[#allocation7 + $0x60] sm:$0xff]
    %v352 = vld [vmem:[#allocation7 + $0x68] sm:$0xff]
    %v353 = vld [vmem:[#allocation7 + $0x70] sm:$0xff]
    %v354 = vld [vmem:[#allocation7 + $0x78] sm:$0xff]
    %v355 = vld [vmem:[%s4] sm:$0x1]
    %v357 = vperm.slane %v355, 0
    %359 = vmatpush.msra.mxu0 %v354
    %360 = vmatpush.msra.mxu0 %v353
    %361 = vmatpush.msra.mxu0 %v352
    %362 = vmatpush.msra.mxu0 %v351
    %363 = vmatpush.msra.mxu0 %v350
    %364 = vmatpush.msra.mxu0 %v349
    %365 = vmatpush.msra.mxu0 %v348
    %366 = vmatpush.msra.mxu0 %v347
    %367 = vmatpush.msra.mxu0 %v346
    %368 = vmatpush.msra.mxu0 %v345
    %369 = vmatpush.msra.mxu0 %v344
    %370 = vmatpush.msra.mxu0 %v343
    %371 = vmatpush.msra.mxu0 %v342
    %372 = vmatpush.msra.mxu0 %v341
    %373 = vmatpush.msra.mxu0 %v340
    %374 = vmatpush.msra.mxu0 %v339
    %375 = vmatmul.f32.gmra.mxu0 %v323
    %v376 = vpop.f32.mrf.mxu0
    %v377 = vadd.f32 %v357, %v376
    %378 = vmatmul.f32.gmra.mxu0 %v324
    %v379 = vpop.f32.mrf.mxu0
    %v380 = vadd.f32 %v357, %v379
    %381 = vmatmul.f32.gmra.mxu0 %v325
    %v382 = vpop.f32.mrf.mxu0
    %v383 = vadd.f32 %v357, %v382
    %384 = vmatmul.f32.gmra.mxu0 %v326
    %v385 = vpop.f32.mrf.mxu0
    %v386 = vadd.f32 %v357, %v385
    %387 = vmatmul.f32.gmra.mxu0 %v327
    %v388 = vpop.f32.mrf.mxu0
    %v389 = vadd.f32 %v357, %v388
    %390 = vmatmul.f32.gmra.mxu0 %v328
    %v391 = vpop.f32.mrf.mxu0
    %v392 = vadd.f32 %v357, %v391
    %393 = vmatmul.f32.gmra.mxu0 %v329
    %v394 = vpop.f32.mrf.mxu0
    %v395 = vadd.f32 %v357, %v394
    %396 = vmatmul.f32.gmra.mxu0 %v330
    %v397 = vpop.f32.mrf.mxu0
    %v398 = vadd.f32 %v357, %v397
    %399 = vmatmul.f32.gmra.mxu0 %v331
    %v400 = vpop.f32.mrf.mxu0
    %v401 = vadd.f32 %v357, %v400
    %402 = vmatmul.f32.gmra.mxu0 %v332
    %v403 = vpop.f32.mrf.mxu0
    %v404 = vadd.f32 %v357, %v403
    %405 = vmatmul.f32.gmra.mxu0 %v333
    %v406 = vpop.f32.mrf.mxu0
    %v407 = vadd.f32 %v357, %v406
    %408 = vmatmul.f32.gmra.mxu0 %v334
    %v409 = vpop.f32.mrf.mxu0
    %v410 = vadd.f32 %v357, %v409
    %411 = vmatmul.f32.gmra.mxu0 %v335
    %v412 = vpop.f32.mrf.mxu0
    %v413 = vadd.f32 %v357, %v412
    %414 = vmatmul.f32.gmra.mxu0 %v336
    %v415 = vpop.f32.mrf.mxu0
    %v416 = vadd.f32 %v357, %v415
    %417 = vmatmul.f32.gmra.mxu0 %v337
    %v418 = vpop.f32.mrf.mxu0
    %v419 = vadd.f32 %v357, %v418
    %420 = vmatmul.f32.gmra.mxu0 %v338
    %v421 = vpop.f32.mrf.mxu0
    %v422 = vadd.f32 %v357, %v421
    %423 = vdwg.mxu0
    %vm424 = vcmp.ge.f32.partialorder %v377, 0.0
    %vm425 = vcmp.ge.f32.partialorder %v380, 0.0
    %vm426 = vcmp.ge.f32.partialorder %v383, 0.0
    %vm427 = vcmp.ge.f32.partialorder %v386, 0.0
    %vm428 = vcmp.ge.f32.partialorder %v389, 0.0
    %vm429 = vcmp.ge.f32.partialorder %v392, 0.0
    %vm430 = vcmp.ge.f32.partialorder %v395, 0.0
    %vm431 = vcmp.ge.f32.partialorder %v398, 0.0
    %vm432 = vcmp.ge.f32.partialorder %v401, 0.0
    %vm433 = vcmp.ge.f32.partialorder %v404, 0.0
    %vm434 = vcmp.ge.f32.partialorder %v407, 0.0
    %vm435 = vcmp.ge.f32.partialorder %v410, 0.0
    %vm436 = vcmp.ge.f32.partialorder %v413, 0.0
    %vm437 = vcmp.ge.f32.partialorder %v416, 0.0
    %vm438 = vcmp.ge.f32.partialorder %v419, 0.0
    %vm439 = vcmp.ge.f32.partialorder %v422, 0.0
    %v440 = vmul.f32 %v377, 0.01
    %v441 = vmul.f32 %v380, 0.01
    %v442 = vmul.f32 %v383, 0.01
    %v443 = vmul.f32 %v386, 0.01
    %v444 = vmul.f32 %v389, 0.01
    %v445 = vmul.f32 %v392, 0.01
    %v446 = vmul.f32 %v395, 0.01
    %v447 = vmul.f32 %v398, 0.01
    %v448 = vmul.f32 %v401, 0.01
    %v449 = vmul.f32 %v404, 0.01
    %v450 = vmul.f32 %v407, 0.01
    %v451 = vmul.f32 %v410, 0.01
    %v452 = vmul.f32 %v413, 0.01
    %v453 = vmul.f32 %v416, 0.01
    %v454 = vmul.f32 %v419, 0.01
    %v455 = vmul.f32 %v422, 0.01
    %v456 = vsel %vm424, %v377, %v440
    %v457 = vsel %vm425, %v380, %v441
    %v458 = vsel %vm426, %v383, %v442
    %v459 = vsel %vm427, %v386, %v443
    %v460 = vsel %vm428, %v389, %v444
    %v461 = vsel %vm429, %v392, %v445
    %v462 = vsel %vm430, %v395, %v446
    %v463 = vsel %vm431, %v398, %v447
    %v464 = vsel %vm432, %v401, %v448
    %v465 = vsel %vm433, %v404, %v449
    %v466 = vsel %vm434, %v407, %v450
    %v467 = vsel %vm435, %v410, %v451
    %v468 = vsel %vm436, %v413, %v452
    %v469 = vsel %vm437, %v416, %v453
    %v470 = vsel %vm438, %v419, %v454
    %v471 = vsel %vm439, %v422, %v455
    %v472 = vld [vmem:[#allocation8] sm:$0xff]
    %v473 = vld [vmem:[#allocation8 + $0x8] sm:$0xff]
    %v474 = vld [vmem:[#allocation8 + $0x10] sm:$0xff]
    %v475 = vld [vmem:[#allocation8 + $0x18] sm:$0xff]
    %v476 = vld [vmem:[#allocation8 + $0x20] sm:$0xff]
    %v477 = vld [vmem:[#allocation8 + $0x28] sm:$0xff]
    %v478 = vld [vmem:[#allocation8 + $0x30] sm:$0xff]
    %v479 = vld [vmem:[#allocation8 + $0x38] sm:$0xff]
    %v480 = vld [vmem:[#allocation8 + $0x40] sm:$0xff]
    %v481 = vld [vmem:[#allocation8 + $0x48] sm:$0xff]
    %v482 = vld [vmem:[#allocation8 + $0x50] sm:$0xff]
    %v483 = vld [vmem:[#allocation8 + $0x58] sm:$0xff]
    %v484 = vld [vmem:[#allocation8 + $0x60] sm:$0xff]
    %v485 = vld [vmem:[#allocation8 + $0x68] sm:$0xff]
    %v486 = vld [vmem:[#allocation8 + $0x70] sm:$0xff]
    %v487 = vld [vmem:[#allocation8 + $0x78] sm:$0xff]
    %v488 = vld [vmem:[#allocation8 + $0x80] sm:$0xff]
    %v489 = vld [vmem:[#allocation8 + $0x88] sm:$0xff]
    %v490 = vld [vmem:[#allocation8 + $0x90] sm:$0xff]
    %v491 = vld [vmem:[#allocation8 + $0x98] sm:$0xff]
    %v492 = vld [vmem:[#allocation8 + $0xa0] sm:$0xff]
    %v493 = vld [vmem:[#allocation8 + $0xa8] sm:$0xff]
    %v494 = vld [vmem:[#allocation8 + $0xb0] sm:$0xff]
    %v495 = vld [vmem:[#allocation8 + $0xb8] sm:$0xff]
    %v496 = vld [vmem:[#allocation8 + $0xc0] sm:$0xff]
    %v497 = vld [vmem:[#allocation8 + $0xc8] sm:$0xff]
    %v498 = vld [vmem:[#allocation8 + $0xd0] sm:$0xff]
    %v499 = vld [vmem:[#allocation8 + $0xd8] sm:$0xff]
    %v500 = vld [vmem:[#allocation8 + $0xe0] sm:$0xff]
    %v501 = vld [vmem:[#allocation8 + $0xe8] sm:$0xff]
    %v502 = vld [vmem:[#allocation8 + $0xf0] sm:$0xff]
    %v503 = vld [vmem:[#allocation8 + $0xf8] sm:$0xff]
    %v504 = vld [vmem:[#allocation8 + $0x100] sm:$0xff]
    %v505 = vld [vmem:[#allocation8 + $0x108] sm:$0xff]
    %v506 = vld [vmem:[#allocation8 + $0x110] sm:$0xff]
    %v507 = vld [vmem:[#allocation8 + $0x118] sm:$0xff]
    %v508 = vld [vmem:[#allocation8 + $0x120] sm:$0xff]
    %v509 = vld [vmem:[#allocation8 + $0x128] sm:$0xff]
    %v510 = vld [vmem:[#allocation8 + $0x130] sm:$0xff]
    %v511 = vld [vmem:[#allocation8 + $0x138] sm:$0xff]
    %v512 = vld [vmem:[#allocation8 + $0x140] sm:$0xff]
    %v513 = vld [vmem:[#allocation8 + $0x148] sm:$0xff]
    %v514 = vld [vmem:[#allocation8 + $0x150] sm:$0xff]
    %v515 = vld [vmem:[#allocation8 + $0x158] sm:$0xff]
    %v516 = vld [vmem:[#allocation8 + $0x160] sm:$0xff]
    %v517 = vld [vmem:[#allocation8 + $0x168] sm:$0xff]
    %v518 = vld [vmem:[#allocation8 + $0x170] sm:$0xff]
    %v519 = vld [vmem:[#allocation8 + $0x178] sm:$0xff]
    %520 = vmatpush.msra.mxu0 %v517
    %521 = vmatpush.msra.mxu0 %v514
    %522 = vmatpush.msra.mxu0 %v511
    %523 = vmatpush.msra.mxu0 %v508
    %524 = vmatpush.msra.mxu0 %v505
    %525 = vmatpush.msra.mxu0 %v502
    %526 = vmatpush.msra.mxu0 %v499
    %527 = vmatpush.msra.mxu0 %v496
    %528 = vmatpush.msra.mxu0 %v493
    %529 = vmatpush.msra.mxu0 %v490
    %530 = vmatpush.msra.mxu0 %v487
    %531 = vmatpush.msra.mxu0 %v484
    %532 = vmatpush.msra.mxu0 %v481
    %533 = vmatpush.msra.mxu0 %v478
    %534 = vmatpush.msra.mxu0 %v475
    %535 = vmatpush.msra.mxu0 %v472
    %536 = vmatmul.f32.gmra.mxu0 %v456
    %v537 = vpop.f32.mrf.mxu0
    %v538 = vadd.f32 0.0, %v537
    %539 = vmatmul.f32.gmra.mxu0 %v457
    %v540 = vpop.f32.mrf.mxu0
    %v541 = vadd.f32 0.0, %v540
    %542 = vmatmul.f32.gmra.mxu0 %v458
    %v543 = vpop.f32.mrf.mxu0
    %v544 = vadd.f32 0.0, %v543
    %545 = vmatmul.f32.gmra.mxu0 %v459
    %v546 = vpop.f32.mrf.mxu0
    %v547 = vadd.f32 0.0, %v546
    %548 = vmatmul.f32.gmra.mxu0 %v460
    %v549 = vpop.f32.mrf.mxu0
    %v550 = vadd.f32 0.0, %v549
    %551 = vmatmul.f32.gmra.mxu0 %v461
    %v552 = vpop.f32.mrf.mxu0
    %v553 = vadd.f32 0.0, %v552
    %554 = vmatmul.f32.gmra.mxu0 %v462
    %v555 = vpop.f32.mrf.mxu0
    %v556 = vadd.f32 0.0, %v555
    %557 = vmatmul.f32.gmra.mxu0 %v463
    %v558 = vpop.f32.mrf.mxu0
    %v559 = vadd.f32 0.0, %v558
    %560 = vmatmul.f32.gmra.mxu0 %v464
    %v561 = vpop.f32.mrf.mxu0
    %v562 = vadd.f32 0.0, %v561
    %563 = vmatmul.f32.gmra.mxu0 %v465
    %v564 = vpop.f32.mrf.mxu0
    %v565 = vadd.f32 0.0, %v564
    %566 = vmatmul.f32.gmra.mxu0 %v466
    %v567 = vpop.f32.mrf.mxu0
    %v568 = vadd.f32 0.0, %v567
    %569 = vmatmul.f32.gmra.mxu0 %v467
    %v570 = vpop.f32.mrf.mxu0
    %v571 = vadd.f32 0.0, %v570
    %572 = vmatmul.f32.gmra.mxu0 %v468
    %v573 = vpop.f32.mrf.mxu0
    %v574 = vadd.f32 0.0, %v573
    %575 = vmatmul.f32.gmra.mxu0 %v469
    %v576 = vpop.f32.mrf.mxu0
    %v577 = vadd.f32 0.0, %v576
    %578 = vmatmul.f32.gmra.mxu0 %v470
    %v579 = vpop.f32.mrf.mxu0
    %v580 = vadd.f32 0.0, %v579
    %581 = vmatmul.f32.gmra.mxu0 %v471
    %v582 = vpop.f32.mrf.mxu0
    %v583 = vadd.f32 0.0, %v582
    %584 = vdwg.mxu0
    %585 = vmatpush.msra.mxu0 %v518
    %586 = vmatpush.msra.mxu0 %v515
    %587 = vmatpush.msra.mxu0 %v512
    %588 = vmatpush.msra.mxu0 %v509
    %589 = vmatpush.msra.mxu0 %v506
    %590 = vmatpush.msra.mxu0 %v503
    %591 = vmatpush.msra.mxu0 %v500
    %592 = vmatpush.msra.mxu0 %v497
    %593 = vmatpush.msra.mxu0 %v494
    %594 = vmatpush.msra.mxu0 %v491
    %595 = vmatpush.msra.mxu0 %v488
    %596 = vmatpush.msra.mxu0 %v485
    %597 = vmatpush.msra.mxu0 %v482
    %598 = vmatpush.msra.mxu0 %v479
    %599 = vmatpush.msra.mxu0 %v476
    %600 = vmatpush.msra.mxu0 %v473
    %601 = vmatmul.f32.gmra.mxu0 %v456
    %v602 = vpop.f32.mrf.mxu0
    %v603 = vadd.f32 0.0, %v602
    %604 = vmatmul.f32.gmra.mxu0 %v457
    %v605 = vpop.f32.mrf.mxu0
    %v606 = vadd.f32 0.0, %v605
    %607 = vmatmul.f32.gmra.mxu0 %v458
    %v608 = vpop.f32.mrf.mxu0
    %v609 = vadd.f32 0.0, %v608
    %610 = vmatmul.f32.gmra.mxu0 %v459
    %v611 = vpop.f32.mrf.mxu0
    %v612 = vadd.f32 0.0, %v611
    %613 = vmatmul.f32.gmra.mxu0 %v460
    %v614 = vpop.f32.mrf.mxu0
    %v615 = vadd.f32 0.0, %v614
    %616 = vmatmul.f32.gmra.mxu0 %v461
    %v617 = vpop.f32.mrf.mxu0
    %v618 = vadd.f32 0.0, %v617
    %619 = vmatmul.f32.gmra.mxu0 %v462
    %v620 = vpop.f32.mrf.mxu0
    %v621 = vadd.f32 0.0, %v620
    %622 = vmatmul.f32.gmra.mxu0 %v463
    %v623 = vpop.f32.mrf.mxu0
    %v624 = vadd.f32 0.0, %v623
    %625 = vmatmul.f32.gmra.mxu0 %v464
    %v626 = vpop.f32.mrf.mxu0
    %v627 = vadd.f32 0.0, %v626
    %628 = vmatmul.f32.gmra.mxu0 %v465
    %v629 = vpop.f32.mrf.mxu0
    %v630 = vadd.f32 0.0, %v629
    %631 = vmatmul.f32.gmra.mxu0 %v466
    %v632 = vpop.f32.mrf.mxu0
    %v633 = vadd.f32 0.0, %v632
    %634 = vmatmul.f32.gmra.mxu0 %v467
    %v635 = vpop.f32.mrf.mxu0
    %v636 = vadd.f32 0.0, %v635
    %637 = vmatmul.f32.gmra.mxu0 %v468
    %v638 = vpop.f32.mrf.mxu0
    %v639 = vadd.f32 0.0, %v638
    %640 = vmatmul.f32.gmra.mxu0 %v469
    %v641 = vpop.f32.mrf.mxu0
    %v642 = vadd.f32 0.0, %v641
    %643 = vmatmul.f32.gmra.mxu0 %v470
    %v644 = vpop.f32.mrf.mxu0
    %v645 = vadd.f32 0.0, %v644
    %646 = vmatmul.f32.gmra.mxu0 %v471
    %v647 = vpop.f32.mrf.mxu0
    %v648 = vadd.f32 0.0, %v647
    %649 = vdwg.mxu0
    %650 = vmatpush.msra.mxu0 %v519
    %651 = vmatpush.msra.mxu0 %v516
    %652 = vmatpush.msra.mxu0 %v513
    %653 = vmatpush.msra.mxu0 %v510
    %654 = vmatpush.msra.mxu0 %v507
    %655 = vmatpush.msra.mxu0 %v504
    %656 = vmatpush.msra.mxu0 %v501
    %657 = vmatpush.msra.mxu0 %v498
    %658 = vmatpush.msra.mxu0 %v495
    %659 = vmatpush.msra.mxu0 %v492
    %660 = vmatpush.msra.mxu0 %v489
    %661 = vmatpush.msra.mxu0 %v486
    %662 = vmatpush.msra.mxu0 %v483
    %663 = vmatpush.msra.mxu0 %v480
    %664 = vmatpush.msra.mxu0 %v477
    %665 = vmatpush.msra.mxu0 %v474
    %666 = vmatmul.f32.gmra.mxu0 %v456
    %v667 = vpop.f32.mrf.mxu0
    %v668 = vadd.f32 0.0, %v667
    %669 = vmatmul.f32.gmra.mxu0 %v457
    %v670 = vpop.f32.mrf.mxu0
    %v671 = vadd.f32 0.0, %v670
    %672 = vmatmul.f32.gmra.mxu0 %v458
    %v673 = vpop.f32.mrf.mxu0
    %v674 = vadd.f32 0.0, %v673
    %675 = vmatmul.f32.gmra.mxu0 %v459
    %v676 = vpop.f32.mrf.mxu0
    %v677 = vadd.f32 0.0, %v676
    %678 = vmatmul.f32.gmra.mxu0 %v460
    %v679 = vpop.f32.mrf.mxu0
    %v680 = vadd.f32 0.0, %v679
    %681 = vmatmul.f32.gmra.mxu0 %v461
    %v682 = vpop.f32.mrf.mxu0
    %v683 = vadd.f32 0.0, %v682
    %684 = vmatmul.f32.gmra.mxu0 %v462
    %v685 = vpop.f32.mrf.mxu0
    %v686 = vadd.f32 0.0, %v685
    %687 = vmatmul.f32.gmra.mxu0 %v463
    %v688 = vpop.f32.mrf.mxu0
    %v689 = vadd.f32 0.0, %v688
    %690 = vmatmul.f32.gmra.mxu0 %v464
    %v691 = vpop.f32.mrf.mxu0
    %v692 = vadd.f32 0.0, %v691
    %693 = vmatmul.f32.gmra.mxu0 %v465
    %v694 = vpop.f32.mrf.mxu0
    %v695 = vadd.f32 0.0, %v694
    %696 = vmatmul.f32.gmra.mxu0 %v466
    %v697 = vpop.f32.mrf.mxu0
    %v698 = vadd.f32 0.0, %v697
    %699 = vmatmul.f32.gmra.mxu0 %v467
    %v700 = vpop.f32.mrf.mxu0
    %v701 = vadd.f32 0.0, %v700
    %702 = vmatmul.f32.gmra.mxu0 %v468
    %v703 = vpop.f32.mrf.mxu0
    %v704 = vadd.f32 0.0, %v703
    %705 = vmatmul.f32.gmra.mxu0 %v469
    %v706 = vpop.f32.mrf.mxu0
    %v707 = vadd.f32 0.0, %v706
    %708 = vmatmul.f32.gmra.mxu0 %v470
    %v709 = vpop.f32.mrf.mxu0
    %v710 = vadd.f32 0.0, %v709
    %711 = vmatmul.f32.gmra.mxu0 %v471
    %v712 = vpop.f32.mrf.mxu0
    %v713 = vadd.f32 0.0, %v712
    %714 = vdwg.mxu0
    %v715 = vld [vmem:[%s6] sm:$0x1]
    %v717 = vperm.slane %v715, 0
    %v719 = vadd.f32 %v538, %v717
    %v720 = vadd.f32 %v541, %v717
    %v721 = vadd.f32 %v544, %v717
    %v722 = vadd.f32 %v547, %v717
    %v723 = vadd.f32 %v550, %v717
    %v724 = vadd.f32 %v553, %v717
    %v725 = vadd.f32 %v556, %v717
    %v726 = vadd.f32 %v559, %v717
    %v727 = vadd.f32 %v562, %v717
    %v728 = vadd.f32 %v565, %v717
    %v729 = vadd.f32 %v568, %v717
    %v730 = vadd.f32 %v571, %v717
    %v731 = vadd.f32 %v574, %v717
    %v732 = vadd.f32 %v577, %v717
    %v733 = vadd.f32 %v580, %v717
    %v734 = vadd.f32 %v583, %v717
    %735 = vst [vmem:[#allocation10] sm:$0xff] %v719
    %736 = vst [vmem:[#allocation10 + $0x8] sm:$0xff] %v720
    %737 = vst [vmem:[#allocation10 + $0x10] sm:$0xff] %v721
    %738 = vst [vmem:[#allocation10 + $0x18] sm:$0xff] %v722
    %739 = vst [vmem:[#allocation10 + $0x20] sm:$0xff] %v723
    %740 = vst [vmem:[#allocation10 + $0x28] sm:$0xff] %v724
    %741 = vst [vmem:[#allocation10 + $0x30] sm:$0xff] %v725
    %742 = vst [vmem:[#allocation10 + $0x38] sm:$0xff] %v726
    %743 = vst [vmem:[#allocation10 + $0x40] sm:$0xff] %v727
    %744 = vst [vmem:[#allocation10 + $0x48] sm:$0xff] %v728
    %745 = vst [vmem:[#allocation10 + $0x50] sm:$0xff] %v729
    %746 = vst [vmem:[#allocation10 + $0x58] sm:$0xff] %v730
    %747 = vst [vmem:[#allocation10 + $0x60] sm:$0xff] %v731
    %748 = vst [vmem:[#allocation10 + $0x68] sm:$0xff] %v732
    %749 = vst [vmem:[#allocation10 + $0x70] sm:$0xff] %v733
    %750 = vst [vmem:[#allocation10 + $0x78] sm:$0xff] %v734
    %v751 = vpack.c.bf16 %v603, %v603
    %v752 = vpack.c.bf16 %v606, %v606
    %v753 = vpack.c.bf16 %v609, %v609
    %v754 = vpack.c.bf16 %v612, %v612
    %v755 = vpack.c.bf16 %v615, %v615
    %v756 = vpack.c.bf16 %v618, %v618
    %v757 = vpack.c.bf16 %v621, %v621
    %v758 = vpack.c.bf16 %v624, %v624
    %v759 = vpack.c.bf16 %v627, %v627
    %v760 = vpack.c.bf16 %v630, %v630
    %v761 = vpack.c.bf16 %v633, %v633
    %v762 = vpack.c.bf16 %v636, %v636
    %v763 = vpack.c.bf16 %v639, %v639
    %v764 = vpack.c.bf16 %v642, %v642
    %v765 = vpack.c.bf16 %v645, %v645
    %v766 = vpack.c.bf16 %v648, %v648
    %767 = vst [vmem:[#allocation11] sm:$0xf] %v751
    %768 = vst [vmem:[#allocation11 + $0x4] sm:$0xf] %v752
    %769 = vst [vmem:[#allocation11 + $0x8] sm:$0xf] %v753
    %770 = vst [vmem:[#allocation11 + $0xc] sm:$0xf] %v754
    %771 = vst [vmem:[#allocation11 + $0x10] sm:$0xf] %v755
    %772 = vst [vmem:[#allocation11 + $0x14] sm:$0xf] %v756
    %773 = vst [vmem:[#allocation11 + $0x18] sm:$0xf] %v757
    %774 = vst [vmem:[#allocation11 + $0x1c] sm:$0xf] %v758
    %775 = vst [vmem:[#allocation11 + $0x20] sm:$0xf] %v759
    %776 = vst [vmem:[#allocation11 + $0x24] sm:$0xf] %v760
    %777 = vst [vmem:[#allocation11 + $0x28] sm:$0xf] %v761
    %778 = vst [vmem:[#allocation11 + $0x2c] sm:$0xf] %v762
    %779 = vst [vmem:[#allocation11 + $0x30] sm:$0xf] %v763
    %780 = vst [vmem:[#allocation11 + $0x34] sm:$0xf] %v764
    %781 = vst [vmem:[#allocation11 + $0x38] sm:$0xf] %v765
    %782 = vst [vmem:[#allocation11 + $0x3c] sm:$0xf] %v766
    %v783 = vpack.c.bf16 %v668, %v668
    %v784 = vpack.c.bf16 %v671, %v671
    %v785 = vpack.c.bf16 %v674, %v674
    %v786 = vpack.c.bf16 %v677, %v677
    %v787 = vpack.c.bf16 %v680, %v680
    %v788 = vpack.c.bf16 %v683, %v683
    %v789 = vpack.c.bf16 %v686, %v686
    %v790 = vpack.c.bf16 %v689, %v689
    %v791 = vpack.c.bf16 %v692, %v692
    %v792 = vpack.c.bf16 %v695, %v695
    %v793 = vpack.c.bf16 %v698, %v698
    %v794 = vpack.c.bf16 %v701, %v701
    %v795 = vpack.c.bf16 %v704, %v704
    %v796 = vpack.c.bf16 %v707, %v707
    %v797 = vpack.c.bf16 %v710, %v710
    %v798 = vpack.c.bf16 %v713, %v713
    %s799 = scalar_lea.vmem [#allocation11], 64
    %800 = vst [vmem:[%s799] sm:$0xf] %v783
    %801 = vst [vmem:[%s799 + $0x4] sm:$0xf] %v784
    %802 = vst [vmem:[%s799 + $0x8] sm:$0xf] %v785
    %803 = vst [vmem:[%s799 + $0xc] sm:$0xf] %v786
    %804 = vst [vmem:[%s799 + $0x10] sm:$0xf] %v787
    %805 = vst [vmem:[%s799 + $0x14] sm:$0xf] %v788
    %806 = vst [vmem:[%s799 + $0x18] sm:$0xf] %v789
    %807 = vst [vmem:[%s799 + $0x1c] sm:$0xf] %v790
    %808 = vst [vmem:[%s799 + $0x20] sm:$0xf] %v791
    %809 = vst [vmem:[%s799 + $0x24] sm:$0xf] %v792
    %810 = vst [vmem:[%s799 + $0x28] sm:$0xf] %v793
    %811 = vst [vmem:[%s799 + $0x2c] sm:$0xf] %v794
    %812 = vst [vmem:[%s799 + $0x30] sm:$0xf] %v795
    %813 = vst [vmem:[%s799 + $0x34] sm:$0xf] %v796
    %814 = vst [vmem:[%s799 + $0x38] sm:$0xf] %v797
    %815 = vst [vmem:[%s799 + $0x3c] sm:$0xf] %v798
    // Predicated region
    $region46: #{tpu_custom_call.1} parent=1 // pred_check
      _
    $region47: #{tpu_custom_call.1} parent=1 // pred_check_branch
      %817 = sbr.rel (0) target = $region49
    $region48: #{tpu_custom_call.1} parent=1 // pred_region
      %819 = vsyncadd [#allocation4], 0
      %s820 = sshll.u32 [#allocation10], 4
      %s821 = int_to_ptr.vmem [resolvable:$true] %s820
      %s822 = sshll.u32 %s7, 4
      %s823 = int_to_ptr.hbm [resolvable:$true] %s822
      %828 = dma.vmem_to_hbm [thread:$0]  %s821, 2048, %s823, [#allocation4], 128, 128, 8
    $region49: #{tpu_custom_call.1} parent=1 // pred_fallthru
      _
    // Predicated region
    $region50: #{tpu_custom_call.1} parent=1 // pred_check
      _
    $region51: #{tpu_custom_call.1} parent=1 // pred_check_branch
      %830 = sbr.rel (0) target = $region53
    $region52: #{tpu_custom_call.1} parent=1 // pred_region
      %832 = vsyncadd [#allocation12], 0
      %s833 = sshll.u32 [#allocation11], 4
      %s834 = int_to_ptr.vmem [resolvable:$true] %s833
      %s835 = sshll.u32 %s8, 4
      %s836 = int_to_ptr.hbm [resolvable:$true] %s835
      %841 = dma.vmem_to_hbm [thread:$0]  %s834, 2048, %s836, [#allocation12], 64, 64, 4
    $region53: #{tpu_custom_call.1} parent=1 // pred_fallthru
      _
    // Predicated region
    $region54: #{tpu_custom_call.1} parent=1 // pred_check
      _
    $region55: #{tpu_custom_call.1} parent=1 // pred_check_branch
      %843 = sbr.rel (0) target = $region57
    $region56: #{tpu_custom_call.1} parent=1 // pred_region
      %845 = dma.done [#allocation4], 2048
    $region57: #{tpu_custom_call.1} parent=1 // pred_fallthru
      _
    // Predicated region
    $region58: #{tpu_custom_call.1} parent=1 // pred_check
      _
    $region59: #{tpu_custom_call.1} parent=1 // pred_check_branch
      %847 = sbr.rel (0) target = $region61
    $region60: #{tpu_custom_call.1} parent=1 // pred_region
      %849 = dma.done [#allocation12], 2048
    $region61: #{tpu_custom_call.1} parent=1 // pred_fallthru
      _
    %850 = vsyncpa [#allocation3], 1
    %851 = vsyncpa [#allocation6], 1
    %852 = vsyncpa [#allocation9], 1
    %853 = vsyncpa [#allocation4], 1
    %854 = vsyncpa [#allocation12], 1

</llo_original>
